<compile_context>
chip_gen: v7x
topology: tpu7x:2x2x1
jax: 0.10.0
libtpu: 0.0.40
codegen_flags: <defaults>
</compile_context>

<pallas_src>
import jax
import jax.numpy as jnp
from jax.experimental import pallas as pl
from jax.experimental.pallas import tpu as pltpu


def t2v_kernel(inp_ref, stamp_ref, W_ref, b_ref, out_ref):
    stamp = stamp_ref[...]                         # (Bt, K)  f32
    stamp_init = stamp[:, 0:1]                     # (Bt, 1)
    # Inherits the torch module's precondition stamp[:, -1] != stamp[:, 0]
    # (otherwise v1 is inf/nan, exactly as in the reference).
    t_aux = stamp[:, -1:] - stamp_init             # (Bt, 1)
    inv_t = pl.reciprocal(t_aux, approx=False)     # (Bt, 1)
    aux = (stamp - stamp_init) * inv_t             # (Bt, K) — reference formula

    # One MXU matmul against the block-diagonal [[w0, 0], [0, w]]:
    #   lane 0  -> aux @ w0 + b0        lanes 1: -> stamp @ w + b
    x = jnp.concatenate([aux, stamp], axis=-1)     # (Bt, 2K)
    tv = jnp.dot(x, W_ref[...], preferred_element_type=jnp.float32) + b_ref[...]

    # sin() on every lane (EUP slot, effectively free); keep lane 0 linear = v1.
    lane = jax.lax.broadcasted_iota(jnp.int32, tv.shape, 1)
    tv = jnp.where(lane == 0, tv, jnp.sin(tv))

    # Single unmasked full-tile store of [input | v1 | v2].
    out_ref[...] = jnp.concatenate(
        [inp_ref[...], tv.astype(out_ref.dtype)], axis=-1)


def _choose_block_b(B, D_in, K, D_out, vmem_budget_bytes):
    """Largest VMEM-safe batch tile, split into a few balanced grid steps."""
    B8 = pl.cdiv(B, 8) * 8
    bytes_per_row = 4 * (D_in + K + D_out)               # f32 inp + stamp + out
    cap = max(8, ((vmem_budget_bytes // (2 * bytes_per_row)) // 8) * 8)  # x2 dbl-buf
    block_b = min(cap, B8)
    MIN_TILE = 1024                                       # never shrink below this
    steps = min(4, B8 // MIN_TILE)
    if steps >= 2:
        balanced = pl.cdiv(pl.cdiv(B8, steps), 8) * 8
        block_b = min(block_b, max(balanced, MIN_TILE))
    return max(8, (block_b // 8) * 8)


def t2v_sine_activation(inp, stamp, w0, b0, w, b, *,
                        vmem_budget_bytes=16 * 1024 * 1024):
    """inp: (B, D_in), stamp: (B, K), w0: (K, 1), b0: (1,), w: (K, F-1), b: (F-1,)."""
    B, D_in = inp.shape
    _, K = stamp.shape
    F_m1 = w.shape[1]
    F = F_m1 + 1
    D_out = D_in + F

    stamp = stamp.astype(jnp.float32)

    # ---- batch tiling ------------------------------------------------------
    block_b = _choose_block_b(B, D_in, K, D_out, vmem_budget_bytes)
    B_pad = pl.cdiv(B, block_b) * block_b
    if B_pad != B:
        pad_rows = B_pad - B
        inp = jnp.concatenate([inp, jnp.zeros((pad_rows, D_in), inp.dtype)], axis=0)
        # Pad rows get an increasing stamp so t_aux != 0 there; they never
        # reach the returned output, this only keeps the math finite.
        pad_stamp = jnp.broadcast_to(
            jnp.arange(K, dtype=jnp.float32), (pad_rows, K))
        stamp = jnp.concatenate([stamp, pad_stamp], axis=0)

    # ---- parameter prep (wrapper-side, once) -------------------------------
    # Block-diagonal fused weight [[w0, 0], [0, w]] and bias [b0 | b].
    W_big = jnp.zeros((2 * K, F), jnp.float32)
    W_big = W_big.at[:K, 0:1].set(w0.astype(jnp.float32))
    W_big = W_big.at[K:, 1:].set(w.astype(jnp.float32))
    b_full = jnp.concatenate(
        [b0.reshape(1).astype(jnp.float32),
         b.reshape(F_m1).astype(jnp.float32)]).reshape(1, F)

    grid = (B_pad // block_b,)
    out = pl.pallas_call(
        t2v_kernel,
        out_shape=jax.ShapeDtypeStruct((B_pad, D_out), inp.dtype),
        grid_spec=pltpu.PrefetchScalarGridSpec(
            num_scalar_prefetch=0,
            grid=grid,
            in_specs=[
                pl.BlockSpec((block_b, D_in), lambda i: (i, 0)),   # input tile
                pl.BlockSpec((block_b, K), lambda i: (i, 0)),      # stamp tile
                pl.BlockSpec((2 * K, F), lambda i: (0, 0)),        # [[w0,0],[0,w]]
                pl.BlockSpec((1, F), lambda i: (0, 0)),            # [b0 | b]
            ],
            out_specs=pl.BlockSpec((block_b, D_out), lambda i: (i, 0)),
        ),
        compiler_params=pltpu.CompilerParams(
            dimension_semantics=("parallel",),
            vmem_limit_bytes=32 * 1024 * 1024,
        ),
    )(inp, stamp, W_big, b_full)

    return out[:B] if B_pad != B else out


def t2v_reference(inp, stamp, w0, b0, w, b):
    stamp_init = stamp[:, 0:1]
    stamp_final = stamp[:, -1:]
    t_aux = stamp_final - stamp_init
    aux = (stamp - stamp_init) / t_aux
    v1 = aux @ w0 + b0
    v2 = jnp.sin(stamp @ w + b)
    return jnp.concatenate([inp, v1, v2], axis=-1)


def _run_case(key, B, D_in, in_features, out_features):
    k_inp, k_stamp, k_base, k_w0, k_b0, k_w, k_b = jax.random.split(key, 7)
    inp = jax.random.normal(k_inp, (B, D_in), dtype=jnp.float32)
    # Strictly increasing per-row "timestamps" so t_aux is well away from 0.
    incr = jax.random.uniform(k_stamp, (B, in_features), minval=0.1, maxval=1.0)
    stamp = (jnp.cumsum(incr, axis=1)
             + jax.random.normal(k_base, (B, 1))).astype(jnp.float32)

    w0 = jax.random.normal(k_w0, (in_features, 1), dtype=jnp.float32)
    b0 = jax.random.normal(k_b0, (1,), dtype=jnp.float32)
    w = jax.random.normal(k_w, (in_features, out_features - 1), dtype=jnp.float32)
    b = jax.random.normal(k_b, (out_features - 1,), dtype=jnp.float32)

    out = jax.block_until_ready(t2v_sine_activation(inp, stamp, w0, b0, w, b))
    ref = t2v_reference(inp, stamp, w0, b0, w, b)
    assert out.shape == (B, D_in + out_features)
    assert jnp.allclose(out, ref, atol=1e-4, rtol=1e-4), "mismatch vs reference"


if __name__ == "__main__":
    key = jax.random.PRNGKey(0)
    k1, k2 = jax.random.split(key)
    # Small shapes consistent with the module's forward:
    #   input: (B, D_in), stamp: (B, in_features)
    _run_case(k1, B=16, D_in=16, in_features=8, out_features=8)
    # Edge case out_features == 1 (w and b are empty).
    _run_case(k2, B=16, D_in=16, in_features=8, out_features=1)
    print("KERNEL_OK")
</pallas_src>

<mosaic_0001>
module attributes {stable_mosaic.version = 11 : i64} {
  func.func @t2v_kernel(%arg0: i32, %arg1: memref<16x16xf32, #tpu.memory_space<vmem>>, %arg2: memref<16x8xf32, #tpu.memory_space<vmem>>, %arg3: memref<16x8xf32, #tpu.memory_space<vmem>>, %arg4: memref<1x8xf32, #tpu.memory_space<vmem>>, %arg5: memref<16x24xf32, #tpu.memory_space<vmem>>) attributes {dimension_semantics = [#tpu.dimension_semantics<parallel>], iteration_bounds = array<i64: 1>, scalar_prefetch = 0 : i64, scratch_operands = 0 : i64, tpu.core_type = #tpu.core_type<tc>, window_params = [{transform_indices = @transform_0, window_bounds = array<i64: 16, 16>}, {transform_indices = @transform_1, window_bounds = array<i64: 16, 8>}, {pipeline_mode = #tpu.pipeline_mode<synchronous>, transform_indices = @transform_2, window_bounds = array<i64: 16, 8>}, {pipeline_mode = #tpu.pipeline_mode<synchronous>, transform_indices = @transform_3, window_bounds = array<i64: 1, 8>}, {transform_indices = @transform_4, window_bounds = array<i64: 16, 24>}]} {
    %c0 = arith.constant 0 : index
    %c0_0 = arith.constant 0 : index
    %0 = vector.load %arg2[%c0, %c0_0] : memref<16x8xf32, #tpu.memory_space<vmem>>, vector<16x8xf32>
    %1 = vector.extract_strided_slice %0 {offsets = [0, 0], sizes = [16, 1], strides = [1, 1]} : vector<16x8xf32> to vector<16x1xf32>
    %2 = vector.extract_strided_slice %0 {offsets = [0, 7], sizes = [16, 1], strides = [1, 1]} : vector<16x8xf32> to vector<16x1xf32>
    %3 = arith.subf %2, %1 : vector<16x1xf32>
    %4 = tpu.reciprocal %3 : vector<16x1xf32> -> vector<16x1xf32>
    %5 = vector.broadcast %1 : vector<16x1xf32> to vector<16x8xf32>
    %6 = arith.subf %0, %5 : vector<16x8xf32>
    %7 = vector.broadcast %4 : vector<16x1xf32> to vector<16x8xf32>
    %8 = arith.mulf %6, %7 : vector<16x8xf32>
    %9 = tpu.concatenate %8, %0 in 1 : vector<16x8xf32>, vector<16x8xf32> -> vector<16x16xf32>
    %c0_1 = arith.constant 0 : index
    %c0_2 = arith.constant 0 : index
    %10 = vector.load %arg3[%c0_1, %c0_2] : memref<16x8xf32, #tpu.memory_space<vmem>>, vector<16x8xf32>
    %cst = arith.constant dense<0.000000e+00> : vector<16x8xf32>
    %11 = tpu.matmul %9, %10, %cst {dimension_numbers = #tpu.dot_dimension_numbers<[1], [0], [0], [1], [0, 0, 1, 1], [], []>} : vector<16x16xf32>, vector<16x8xf32>, vector<16x8xf32> -> vector<16x8xf32>
    %c0_3 = arith.constant 0 : index
    %c0_4 = arith.constant 0 : index
    %12 = vector.load %arg4[%c0_3, %c0_4] : memref<1x8xf32, #tpu.memory_space<vmem>>, vector<1x8xf32>
    %13 = vector.broadcast %12 : vector<1x8xf32> to vector<16x8xf32>
    %14 = arith.addf %11, %13 : vector<16x8xf32>
    %15 = tpu.iota {dimensions = array<i32: 1>} : vector<16x8xi32>
    %c0_i32 = arith.constant 0 : i32
    %16 = vector.broadcast %c0_i32 : i32 to vector<16x8xi32>
    %17 = arith.cmpi eq, %15, %16 : vector<16x8xi32>
    %18 = math.sin %14 : vector<16x8xf32>
    %19 = arith.select %17, %14, %18 : vector<16x8xi1>, vector<16x8xf32>
    %c0_5 = arith.constant 0 : index
    %c0_6 = arith.constant 0 : index
    %20 = vector.load %arg1[%c0_5, %c0_6] : memref<16x16xf32, #tpu.memory_space<vmem>>, vector<16x16xf32>
    %21 = tpu.concatenate %20, %19 in 1 : vector<16x16xf32>, vector<16x8xf32> -> vector<16x24xf32>
    %c0_7 = arith.constant 0 : index
    %c0_8 = arith.constant 0 : index
    %22 = vector.load %arg5[%c0_7, %c0_8] : memref<16x24xf32, #tpu.memory_space<vmem>>, vector<16x24xf32>
    tpu.vector_store %arg5[%c0_7, %c0_8], %21 {strides = array<i32>} : memref<16x24xf32, #tpu.memory_space<vmem>>, vector<16x24xf32>,
    return
  }
  func.func @transform_0(%arg0: i32) -> (i32, i32) {
    %c0_i32 = arith.constant 0 : i32
    %c0_i32_0 = arith.constant 0 : i32
    return %arg0, %c0_i32 : i32, i32
  }
  func.func @transform_1(%arg0: i32) -> (i32, i32) {
    %c0_i32 = arith.constant 0 : i32
    %c0_i32_0 = arith.constant 0 : i32
    return %arg0, %c0_i32 : i32, i32
  }
  func.func @transform_2(%arg0: i32) -> (i32, i32) {
    %c0_i32 = arith.constant 0 : i32
    %c0_i32_0 = arith.constant 0 : i32
    %c0_i32_1 = arith.constant 0 : i32
    return %c0_i32, %c0_i32_0 : i32, i32
  }
  func.func @transform_3(%arg0: i32) -> (i32, i32) {
    %c0_i32 = arith.constant 0 : i32
    %c0_i32_0 = arith.constant 0 : i32
    %c0_i32_1 = arith.constant 0 : i32
    return %c0_i32, %c0_i32_0 : i32, i32
  }
  func.func @transform_4(%arg0: i32) -> (i32, i32) {
    %c0_i32 = arith.constant 0 : i32
    %c0_i32_0 = arith.constant 0 : i32
    return %arg0, %c0_i32 : i32, i32
  }
}

</mosaic_0001>

<llo_original>
// kernel: tpu_custom_call.1
$region0: #{tpu_custom_call.1}
  #allocation0 [shape = 'u32[]', space=smem, size = 0x4, offset = 0x4, fixed_abs, tag = 'smem constant byte address 0x4 - core index']
  #allocation1 [shape = 'u32[144,128]{1,0:T(1,128)}', space=vmem, size = 0x12000, scoped, tag = 'internal scratch']
  %s0 = inlined_call_operand.vmem [shape: f32[16,16], index: 0, kind: input, shape index: {}]
  %s1 = inlined_call_operand.vmem [shape: f32[16,8], index: 1, kind: input, shape index: {}]
  %s2 = inlined_call_operand.vmem [shape: f32[16,8], index: 2, kind: input, shape index: {}]
  %s3 = inlined_call_operand.vmem [shape: f32[1,8], index: 3, kind: input, shape index: {}]
  %s4 = inlined_call_operand.hbm [shape: f32[16,24], index: 4, kind: output, shape index: {}]
  %s5 = sld [smem:[#allocation0]]
  $region26: #{tpu_custom_call.1} parent=0
    _
  %s7 = ssub.s32 1, %s5
  %s8 = scalar_select 0, %s7, %s5
  $region1: #{tpu_custom_call.1} parent=0
    #allocation2 [shape = 'u8[8192]{0}', space=vmem, size = 0x2000, scoped, tag = 'output window, operand 0, single buffered']
    #allocation3 [shape = 's32[1]{0}', space=sflag, size = 0x4, scoped, tag = 'scoped memory for tpu_custom_call.1']
    %9 = vsyncpa [#allocation3], 0
    // Predicated region
    $region2: #{tpu_custom_call.1} parent=1 // pred_check
      _
    $region3: #{tpu_custom_call.1} parent=1 // pred_check_branch
      %11 = sbr.rel (0) target = $region5
    $region4: #{tpu_custom_call.1} parent=1 // pred_region
      _
    $region5: #{tpu_custom_call.1} parent=1 // pred_fallthru
      _
    // Predicated region
    $region6: #{tpu_custom_call.1} parent=1 // pred_check
      _
    $region7: #{tpu_custom_call.1} parent=1 // pred_check_branch
      %13 = sbr.rel (0) target = $region9
    $region8: #{tpu_custom_call.1} parent=1 // pred_region
      _
    $region9: #{tpu_custom_call.1} parent=1 // pred_fallthru
      _
    // Predicated region
    $region10: #{tpu_custom_call.1} parent=1 // pred_check
      _
    $region11: #{tpu_custom_call.1} parent=1 // pred_check_branch
      %15 = sbr.rel (0) target = $region13
    $region12: #{tpu_custom_call.1} parent=1 // pred_region
      _
    $region13: #{tpu_custom_call.1} parent=1 // pred_fallthru
      _
    // Predicated region
    $region14: #{tpu_custom_call.1} parent=1 // pred_check
      _
    $region15: #{tpu_custom_call.1} parent=1 // pred_check_branch
      %17 = sbr.rel (0) target = $region17
    $region16: #{tpu_custom_call.1} parent=1 // pred_region
      _
    $region17: #{tpu_custom_call.1} parent=1 // pred_fallthru
      _
    %v18 = vld [vmem:[%s1] sm:$0xff]
    %v19 = vld [vmem:[%s1 + $0x8] sm:$0xff]
    %22 = vrot.lane.b32.xlu0 %v18, 7
    %v23 = vpop.permute.xlu0 %22
    %24 = vrot.lane.b32.xlu0 %v19, 7
    %v25 = vpop.permute.xlu0 %24
    %v28 = vsub.f32 %v18, %v23
    %v29 = vsub.f32 %v19, %v25
    %v30 = vrcp.pop %v28
    %v31 = vrcp.pop %v29
    %32 = vset.pattern.permute.xlu0 0
    %33 = vperm.xlu0 %32, %v18
    %v34 = vpop.permute.xlu0 %33
    %36 = vset.pattern.permute.xlu0 0
    %37 = vperm.xlu0 %36, %v19
    %v38 = vpop.permute.xlu0 %37
    %v40 = vsub.f32 %v18, %v34
    %v41 = vsub.f32 %v19, %v38
    %43 = vset.pattern.permute.xlu0 7
    %44 = vperm.xlu0 %43, %v30
    %v45 = vpop.permute.xlu0 %44
    %48 = vset.pattern.permute.xlu0 7
    %49 = vperm.xlu0 %48, %v31
    %v50 = vpop.permute.xlu0 %49
    %v52 = vmul.f32 %v40, %v45
    %v53 = vmul.f32 %v41, %v50
    %54 = vrot.lane.b32.xlu0 %v18, 8
    %v55 = vpop.permute.xlu0 %54
    %56 = vrot.lane.b32.xlu0 %v19, 8
    %v57 = vpop.permute.xlu0 %56
    %vm60 = vcmask 64512
    %v61 = vsel %vm60, %v52, %v55
    %v62 = vsel %vm60, %v53, %v57
    %v63 = vld [vmem:[%s2] sm:$0xff]
    %v64 = vld [vmem:[%s2 + $0x8] sm:$0xff]
    %v65 = vld [vmem:[%s3] sm:$0x1]
    %v67 = vlaneseq
    %v68 = vshrl.u32 %v67, 7
    %v69 = vsub.s32 0, %v68
    %v70 = vrot.slane %v65, %v69
    %vm72 = vcmask 130048
    %v74 = vsel %vm72, %v61, 0
    %v77 = vsel %vm72, %v62, 0
    %79 = vmatprep.subr.mxu0 0.0
    %80 = vmatpush1.msra.mxu0 %v63
    %81 = vmatprep.subr.mxu0 0.0
    %82 = vmatpush1.msra.mxu0 %v64
    %83 = vmatprep.subr.mxu0 0.0
    %84 = vmatpush1.msra.mxu0 0.0
    %85 = vmatprep.subr.mxu0 0.0
    %86 = vmatpush1.msra.mxu0 0.0
    %87 = vmatprep.subr.mxu0 0.0
    %88 = vmatpush1.msra.mxu0 0.0
    %89 = vmatprep.subr.mxu0 0.0
    %90 = vmatpush1.msra.mxu0 0.0
    %91 = vmatprep.subr.mxu0 0.0
    %92 = vmatpush1.msra.mxu0 0.0
    %93 = vmatprep.subr.mxu0 0.0
    %94 = vmatpush1.msra.mxu0 0.0
    %95 = vmatprep.subr.mxu0 0.0
    %96 = vmatpush1.msra.mxu0 0.0
    %97 = vmatprep.subr.mxu0 0.0
    %98 = vmatpush1.msra.mxu0 0.0
    %99 = vmatprep.subr.mxu0 0.0
    %100 = vmatpush1.msra.mxu0 0.0
    %101 = vmatprep.subr.mxu0 0.0
    %102 = vmatpush1.msra.mxu0 0.0
    %103 = vmatprep.subr.mxu0 0.0
    %104 = vmatpush1.msra.mxu0 0.0
    %105 = vmatprep.subr.mxu0 0.0
    %106 = vmatpush1.msra.mxu0 0.0
    %107 = vmatprep.subr.mxu0 0.0
    %108 = vmatpush1.msra.mxu0 0.0
    %109 = vmatprep.subr.mxu0 0.0
    %110 = vmatpush1.msra.mxu0 0.0
    %111 = vmatprep.subr.mxu0 0.0
    %112 = vmatpush1.msra.mxu0 0.0
    %113 = vmatprep.subr.mxu0 0.0
    %114 = vmatpush1.msra.mxu0 0.0
    %115 = vmatprep.subr.mxu0 0.0
    %116 = vmatpush1.msra.mxu0 0.0
    %117 = vmatprep.subr.mxu0 0.0
    %118 = vmatpush1.msra.mxu0 0.0
    %119 = vmatprep.subr.mxu0 0.0
    %120 = vmatpush1.msra.mxu0 0.0
    %121 = vmatprep.subr.mxu0 0.0
    %122 = vmatpush1.msra.mxu0 0.0
    %123 = vmatprep.subr.mxu0 0.0
    %124 = vmatpush1.msra.mxu0 0.0
    %125 = vmatprep.subr.mxu0 0.0
    %126 = vmatpush1.msra.mxu0 0.0
    %127 = vmatprep.subr.mxu0 0.0
    %128 = vmatpush1.msra.mxu0 0.0
    %129 = vmatprep.subr.mxu0 0.0
    %130 = vmatpush1.msra.mxu0 0.0
    %131 = vmatprep.subr.mxu0 0.0
    %132 = vmatpush1.msra.mxu0 0.0
    %133 = vmatprep.subr.mxu0 0.0
    %134 = vmatpush1.msra.mxu0 0.0
    %135 = vmatprep.subr.mxu0 0.0
    %136 = vmatpush1.msra.mxu0 0.0
    %137 = vmatprep.subr.mxu0 0.0
    %138 = vmatpush1.msra.mxu0 0.0
    %139 = vmatprep.subr.mxu0 0.0
    %140 = vmatpush1.msra.mxu0 0.0
    %141 = vmatprep.subr.mxu0 0.0
    %142 = vmatpush1.msra.mxu0 0.0
    %143 = vmatprep.mubr.f32.mxu0 0.0
    %144 = vmatmul.mubr.f32.gmra.mrb[0].mxu0 %v74
    %v145 = vpop.f32.mrb[0].mxu0
    %v146 = vadd.f32 %v70, %v145
    %v147 = vpop.f32.mrb[0].mxu0
    %148 = vmatprep.mubr.f32.mxu0 0.0
    %149 = vmatmul.mubr.f32.gmra.mrb[0].mxu0 %v77
    %v150 = vpop.f32.mrb[0].mxu0
    %v151 = vadd.f32 %v70, %v150
    %v152 = vpop.f32.mrb[0].mxu0
    %153 = vdwg.mxu0
    %v154 = vlaneseq
    %v155 = vand.u32 %v154, 127
    %vm156 = vcmp.eq.s32.totalorder %v155, 0
    %v157 = vand.u32 2147483647, %v146
    %vm158 = vcmp.le.f32.partialorder %v157, 0.7853982
    %vm159 = vcmp.lt.s32.totalorder %v146, 0
    %v160 = vand.u32 %v146, 2139095040
    %v161 = vshrl.u32 %v160, 23
    %v162 = vsub.s32 %v161, 127
    %v163 = vand.u32 2147483647, %v146
    %v164 = vand.u32 %v163, 8388607
    %v165 = vor.u32 %v164, 8388608
    %v166 = vsub.s32 0, %v165
    %v167 = vadd.s32 %v162, 1
    %vm168 = vcmp.gt.s32.totalorder %v167, 0
    %v169 = vsel %vm168, %v167, 0
    %v170 = vshrl.u32 %v169, 5
    %v171 = vand.u32 %v169, 31
    %v172 = vsub.s32 32, %v171
    %v173 = vshrl.u32 683565275, %v172
    %v174 = vshll.u32 683565275, %v171
    %v175 = vshrl.u32 2475754826, %v172
    %v176 = vor.u32 %v174, %v175
    %v177 = vshll.u32 2475754826, %v171
    %v178 = vshrl.u32 2131351028, %v172
    %v179 = vor.u32 %v177, %v178
    %v180 = vshll.u32 2131351028, %v171
    %v181 = vshrl.u32 2102212464, %v172
    %v182 = vor.u32 %v180, %v181
    %v183 = vshll.u32 2102212464, %v171
    %v184 = vshrl.u32 920167782, %v172
    %v185 = vor.u32 %v183, %v184
    %v186 = vshll.u32 920167782, %v171
    %v187 = vshrl.u32 1326507024, %v172
    %v188 = vor.u32 %v186, %v187
    %vm189 = vcmp.lt.s32.totalorder %v170, 1
    %vm190 = vcmp.lt.s32.totalorder %v170, 2
    %vm191 = vcmp.lt.s32.totalorder %v170, 3
    %vm192 = vcmp.lt.s32.totalorder %v170, 4
    %v193 = vsel %vm189, %v173, %v176
    %v194 = vsel %vm192, %v182, 2102212464
    %v195 = vsel %vm191, %v179, %v194
    %v196 = vsel %vm190, %v193, %v195
    %v197 = vsel %vm189, %v176, %v179
    %v198 = vsel %vm192, %v185, 920167782
    %v199 = vsel %vm191, %v182, %v198
    %v200 = vsel %vm190, %v197, %v199
    %v201 = vsel %vm189, %v179, %v182
    %v202 = vsel %vm192, %v188, 1326507024
    %v203 = vsel %vm191, %v185, %v202
    %v204 = vsel %vm190, %v201, %v203
    %v205 = vshll.u32 %v165, 8
    %v206 = vmul.u32.u64.compose %v205, %v204
    %v207 = vextract.low.u32 %v206
    %v208 = vextract.high.u32 %v206
    %v209 = vmul.u32.u64.compose %v205, %v200
    %v210 = vextract.low.u32 %v209
    %v211 = vextract.high.u32 %v209
    %v212 = vmul.u32 %v205, %v196
    %v213 = vadd.s32 %v208, %v210
    %vm214 = vc.u32 %v208, %v210
    %v215 = vadd.s32 %v211, 1
    %v216 = vsel %vm214, %v215, %v211
    %v217 = vadd.s32 %v212, %v216
    %v218 = vadd.s32 %v217, 536870912
    %v219 = vshrl.u32 %v218, 30
    %v220 = vshll.u32 %v219, 30
    %v221 = vsub.s32 %v217, %v220
    %vm222 = vcmp.lt.s32.totalorder %v221, 0
    %v223 = vsub.s32 0, %v221
    %v224 = vsel %vm222, %v223, %v221
    %v225 = vclz %v224
    %v226 = vsub.s32 %v225, 2
    %vm227 = vcmp.gt.s32.totalorder 0, %v226
    %v228 = vsel %vm227, 0, %v226
    %v229 = vsub.s32 32, %v228
    %v230 = vshll.u32 %v221, %v228
    %v231 = vshrl.u32 %v213, %v229
    %v232 = vor.u32 %v230, %v231
    %v233 = vsub.s32 4294967266, %v228
    %v234 = vadd.s32 %v233, 127
    %v235 = vshll.u32 %v234, 23
    %v236 = vor.u32 4788187, %v235
    %v237 = vand.u32 2147483647, %v236
    %v239 = vcvt.s32.f32 %v232
    %v240 = vmul.f32 %v239, %v237
    %v241 = vxor.u32 %v240, 2147483648
    %v242 = vsel %vm159, %v241, %v240
    %v243 = vsub.s32 4, %v219
    %v244 = vsel %vm159, %v243, %v219
    %v245 = vsel %vm158, %v146, %v242
    %v246 = vsel %vm158, 0, %v244
    %v247 = vcosq.f32.pop %v245
    %v248 = vsinq.f32.pop %v245
    %vm249 = vweird.f32 %v146
    %v250 = vadd.s32 %v246, 3
    %v251 = vand.u32 %v250, 3
    %vm252 = vcmp.lt.s32.totalorder %v251, 2
    %vm253 = vcmp.eq.s32.totalorder %v251, 0
    %v254 = vxor.u32 %v248, 2147483648
    %v255 = vsel %vm253, %v247, %v254
    %vm256 = vcmp.eq.s32.totalorder %v251, 2
    %v257 = vxor.u32 %v247, 2147483648
    %v258 = vsel %vm256, %v257, %v248
    %v259 = vsel %vm252, %v255, %v258
    %v260 = vsel %vm249, nan, %v259
    %v261 = vand.u32 2147483647, %v151
    %vm262 = vcmp.le.f32.partialorder %v261, 0.7853982
    %vm263 = vcmp.lt.s32.totalorder %v151, 0
    %v264 = vand.u32 %v151, 2139095040
    %v265 = vshrl.u32 %v264, 23
    %v266 = vsub.s32 %v265, 127
    %v267 = vand.u32 2147483647, %v151
    %v268 = vand.u32 %v267, 8388607
    %v269 = vor.u32 %v268, 8388608
    %v270 = vsub.s32 0, %v269
    %v271 = vadd.s32 %v266, 1
    %vm272 = vcmp.gt.s32.totalorder %v271, 0
    %v273 = vsel %vm272, %v271, 0
    %v274 = vshrl.u32 %v273, 5
    %v275 = vand.u32 %v273, 31
    %v276 = vsub.s32 32, %v275
    %v277 = vshrl.u32 683565275, %v276
    %v278 = vshll.u32 683565275, %v275
    %v279 = vshrl.u32 2475754826, %v276
    %v280 = vor.u32 %v278, %v279
    %v281 = vshll.u32 2475754826, %v275
    %v282 = vshrl.u32 2131351028, %v276
    %v283 = vor.u32 %v281, %v282
    %v284 = vshll.u32 2131351028, %v275
    %v285 = vshrl.u32 2102212464, %v276
    %v286 = vor.u32 %v284, %v285
    %v287 = vshll.u32 2102212464, %v275
    %v288 = vshrl.u32 920167782, %v276
    %v289 = vor.u32 %v287, %v288
    %v290 = vshll.u32 920167782, %v275
    %v291 = vshrl.u32 1326507024, %v276
    %v292 = vor.u32 %v290, %v291
    %vm293 = vcmp.lt.s32.totalorder %v274, 1
    %vm294 = vcmp.lt.s32.totalorder %v274, 2
    %vm295 = vcmp.lt.s32.totalorder %v274, 3
    %vm296 = vcmp.lt.s32.totalorder %v274, 4
    %v297 = vsel %vm293, %v277, %v280
    %v298 = vsel %vm296, %v286, 2102212464
    %v299 = vsel %vm295, %v283, %v298
    %v300 = vsel %vm294, %v297, %v299
    %v301 = vsel %vm293, %v280, %v283
    %v302 = vsel %vm296, %v289, 920167782
    %v303 = vsel %vm295, %v286, %v302
    %v304 = vsel %vm294, %v301, %v303
    %v305 = vsel %vm293, %v283, %v286
    %v306 = vsel %vm296, %v292, 1326507024
    %v307 = vsel %vm295, %v289, %v306
    %v308 = vsel %vm294, %v305, %v307
    %v309 = vshll.u32 %v269, 8
    %v310 = vmul.u32.u64.compose %v309, %v308
    %v311 = vextract.low.u32 %v310
    %v312 = vextract.high.u32 %v310
    %v313 = vmul.u32.u64.compose %v309, %v304
    %v314 = vextract.low.u32 %v313
    %v315 = vextract.high.u32 %v313
    %v316 = vmul.u32 %v309, %v300
    %v317 = vadd.s32 %v312, %v314
    %vm318 = vc.u32 %v312, %v314
    %v319 = vadd.s32 %v315, 1
    %v320 = vsel %vm318, %v319, %v315
    %v321 = vadd.s32 %v316, %v320
    %v322 = vadd.s32 %v321, 536870912
    %v323 = vshrl.u32 %v322, 30
    %v324 = vshll.u32 %v323, 30
    %v325 = vsub.s32 %v321, %v324
    %vm326 = vcmp.lt.s32.totalorder %v325, 0
    %v327 = vsub.s32 0, %v325
    %v328 = vsel %vm326, %v327, %v325
    %v329 = vclz %v328
    %v330 = vsub.s32 %v329, 2
    %vm331 = vcmp.gt.s32.totalorder 0, %v330
    %v332 = vsel %vm331, 0, %v330
    %v333 = vsub.s32 32, %v332
    %v334 = vshll.u32 %v325, %v332
    %v335 = vshrl.u32 %v317, %v333
    %v336 = vor.u32 %v334, %v335
    %v337 = vsub.s32 4294967266, %v332
    %v338 = vadd.s32 %v337, 127
    %v339 = vshll.u32 %v338, 23
    %v340 = vor.u32 4788187, %v339
    %v341 = vand.u32 2147483647, %v340
    %v343 = vcvt.s32.f32 %v336
    %v344 = vmul.f32 %v343, %v341
    %v345 = vxor.u32 %v344, 2147483648
    %v346 = vsel %vm263, %v345, %v344
    %v347 = vsub.s32 4, %v323
    %v348 = vsel %vm263, %v347, %v323
    %v349 = vsel %vm262, %v151, %v346
    %v350 = vsel %vm262, 0, %v348
    %v351 = vcosq.f32.pop %v349
    %v352 = vsinq.f32.pop %v349
    %vm353 = vweird.f32 %v151
    %v354 = vadd.s32 %v350, 3
    %v355 = vand.u32 %v354, 3
    %vm356 = vcmp.lt.s32.totalorder %v355, 2
    %vm357 = vcmp.eq.s32.totalorder %v355, 0
    %v358 = vxor.u32 %v352, 2147483648
    %v359 = vsel %vm357, %v351, %v358
    %vm360 = vcmp.eq.s32.totalorder %v355, 2
    %v361 = vxor.u32 %v351, 2147483648
    %v362 = vsel %vm360, %v361, %v352
    %v363 = vsel %vm356, %v359, %v362
    %v364 = vsel %vm353, nan, %v363
    %v365 = vsel %vm156, %v146, %v260
    %v366 = vsel %vm156, %v151, %v364
    %v367 = vld [vmem:[%s0] sm:$0xff]
    %v368 = vld [vmem:[%s0 + $0x8] sm:$0xff]
    %371 = vrot.lane.b32.xlu0 %v365, 16
    %v372 = vpop.permute.xlu0 %371
    %373 = vrot.lane.b32.xlu0 %v366, 16
    %v374 = vpop.permute.xlu0 %373
    %v377 = vsel %vm72, %v367, %v372
    %v378 = vsel %vm72, %v368, %v374
    %vm379 = vcmask 195584
    %380 = vst.msk [vmem:[#allocation2] sm:$0xff] %vm379, %v377
    %381 = vst.msk [vmem:[#allocation2 + $0x8] sm:$0xff] %vm379, %v378
    // Predicated region
    $region18: #{tpu_custom_call.1} parent=1 // pred_check
      _
    $region19: #{tpu_custom_call.1} parent=1 // pred_check_branch
      %383 = sbr.rel (0) target = $region21
    $region20: #{tpu_custom_call.1} parent=1 // pred_region
      %s385 = ssub.s32 256, 256
      %386 = vsyncadd [#allocation3], %s385
      %s387 = sshll.u32 [#allocation2], 4
      %s388 = int_to_ptr.vmem [resolvable:$true] %s387
      %393 = dma.vmem_to_hbm [thread:$0]  %s388, 256, %s4, [#allocation3], 128, 128, 8
    $region21: #{tpu_custom_call.1} parent=1 // pred_fallthru
      _
    // Predicated region
    $region22: #{tpu_custom_call.1} parent=1 // pred_check
      _
    $region23: #{tpu_custom_call.1} parent=1 // pred_check_branch
      %395 = sbr.rel (0) target = $region25
    $region24: #{tpu_custom_call.1} parent=1 // pred_region
      %396 = dma.done [#allocation3], 256
    $region25: #{tpu_custom_call.1} parent=1 // pred_fallthru
      _
    %397 = vsyncpa [#allocation3], 1

</llo_original>
